<compile_context>
chip_gen: v7x
topology: tpu7x:2x2x1
jax: 0.10.0
libtpu: 0.0.40
codegen_flags: <defaults>
</compile_context>

<pallas_src>
import functools

import jax
import jax.numpy as jnp
import numpy as np
from jax.experimental import pallas as pl
from jax.experimental.pallas import tpu as pltpu


def _convlstm_kernel(pt_ref, w_ref, b_ref, c_ref, h_out_ref, c_out_ref, *, C_hd):
    """One batch element per grid step.

    pt_ref    : (1, Kp, HW)     im2col patches (zero-padded along Kp); lanes = HW
    w_ref     : (4*C_hd, Kp)    flattened conv weight (zero-padded along Kp)
    b_ref     : (4*C_hd, 1)     conv bias (column vector, f32)
    c_ref     : (1, C_hd, HW)   previous cell state, NCHW-flat
    h_out_ref : (1, C_hd, HW)
    c_out_ref : (1, C_hd, HW)
    """
    # Single MXU matmul: (4*C_hd, Kp) @ (Kp, HW) -> (4*C_hd, HW), f32 accumulate.
    y = jnp.dot(w_ref[...], pt_ref[0], preferred_element_type=jnp.float32)
    # Bias epilogue: one full-width row-wise add (lane broadcast), kept in f32.
    y = y + b_ref[...].astype(jnp.float32)

    # Full-width non-linearities: rows [0, 3*C_hd) are the sigmoid gates
    # (i, f, o), rows [3*C_hd, 4*C_hd) are the tanh gate (g).  One dense
    # sigmoid pass + one dense tanh pass + a select instead of four
    # quarter-width passes.
    row = jax.lax.broadcasted_iota(jnp.int32, y.shape, 0)
    act = jnp.where(row < 3 * C_hd, jax.nn.sigmoid(y), jnp.tanh(y))

    i_g = act[0 * C_hd:1 * C_hd, :]      # sublane slices (offsets multiple of 8)
    f_g = act[1 * C_hd:2 * C_hd, :]
    o_g = act[2 * C_hd:3 * C_hd, :]
    g_g = act[3 * C_hd:4 * C_hd, :]

    c_cur = c_ref[0].astype(jnp.float32)            # (C_hd, HW), lane-dense
    c_next = f_g * c_cur + i_g * g_g
    h_next = o_g * jnp.tanh(c_next)

    c_out_ref[0] = c_next.astype(c_out_ref.dtype)   # unmasked 256-lane stores
    h_out_ref[0] = h_next.astype(h_out_ref.dtype)


def _prepare_conv_params(weight, bias, *, kernel_size, c_total, k_pad,
                         compute_dtype):
    """Flatten the OIHW conv weight to (4*C_hd, Kp), matching the im2col row
    order (input-channel-major, then kernel taps), zero-padded to Kp columns.

    For a time-unrolled ConvLSTM, call this ONCE outside the time loop."""
    K = kernel_size
    c4 = weight.shape[0]
    # (oc, cin, kh, kw) -> (oc, cin*K*K) ; row order matches _build_patches.
    w_flat = weight.reshape(c4, c_total * K * K)
    w_flat = jnp.pad(w_flat, ((0, 0), (0, k_pad - c_total * K * K)))
    w_flat = w_flat.astype(compute_dtype)
    b_col = bias.reshape(c4, 1).astype(jnp.float32)
    return w_flat, b_col


def _build_patches(x_cur, h_cur, *, kernel_size, padding, k_pad, compute_dtype):
    """im2col directly in NCHW: returns (B, Kp, H*W) patches, lane-dense,
    zero-padded along the contraction (Kp) axis."""
    K, P = kernel_size, padding
    B, _, H, W = x_cur.shape
    xh = jnp.concatenate([x_cur, h_cur], axis=1)          # (B, C_tot, H, W)
    c_tot = xh.shape[1]
    xh_p = jnp.pad(xh, ((0, 0), (0, 0), (P, P), (P, P)))
    taps = [xh_p[:, :, dy:dy + H, dx:dx + W]              # each (B, C_tot, H, W)
            for dy in range(K) for dx in range(K)]
    pt = jnp.stack(taps, axis=2)                          # (B, C_tot, K*K, H, W)
    pt = pt.reshape(B, c_tot * K * K, H * W)              # row = cin*K*K + kh*K + kw
    pt = jnp.pad(pt, ((0, 0), (0, k_pad - c_tot * K * K), (0, 0)))
    return pt.astype(compute_dtype)


def convlstm_cell_forward(x_cur, h_cur, c_cur, weight, bias, *,
                          kernel_size=3, padding=1,
                          compute_dtype=jnp.float32):
    """ConvLSTMCell.forward.

    x_cur : [B, C_in, H, W]   (NCHW, like PyTorch)
    h_cur : [B, C_hd, H, W]
    c_cur : [B, C_hd, H, W]
    weight: [4*C_hd, C_in + C_hd, K, K]   (PyTorch OIHW conv weight)
    bias  : [4*C_hd]
    compute_dtype: dtype of the MXU matmul operands (jnp.bfloat16 recommended
                   on v6e/v7x); accumulation and gate math are always f32.
    returns (h_next, c_next) in NCHW.
    """
    B, C_in, H, W = x_cur.shape
    C_hd = h_cur.shape[1]
    K = kernel_size
    C_tot = C_in + C_hd
    HW = H * W

    assert 2 * padding == K - 1, "ConvLSTM recurrence requires 'same' conv output"
    assert HW % 128 == 0 and C_hd % 8 == 0, "demo kernel assumes tile-aligned sizes"

    k_real = C_tot * K * K
    Kp = ((k_real + 127) // 128) * 128        # pad contraction dim to lane multiple

    # --- wrapper glue (plain JAX, no transposes anywhere) -------------------
    w_flat, b_col = _prepare_conv_params(
        weight, bias, kernel_size=K, c_total=C_tot, k_pad=Kp,
        compute_dtype=compute_dtype)
    patches = _build_patches(
        x_cur, h_cur, kernel_size=K, padding=padding, k_pad=Kp,
        compute_dtype=compute_dtype)
    c_flat = c_cur.reshape(B, C_hd, HW)       # NCHW-flat, metadata-only reshape

    kernel = functools.partial(_convlstm_kernel, C_hd=C_hd)

    itemsize = jnp.dtype(compute_dtype).itemsize
    cost = pl.CostEstimate(
        flops=2 * B * 4 * C_hd * k_real * HW,
        transcendentals=9 * B * C_hd * HW,                 # sigmoid+tanh full width + tanh(c)
        bytes_accessed=(patches.size * itemsize + w_flat.size * itemsize
                        + b_col.size * 4 + c_flat.size * 4
                        + 2 * B * C_hd * HW * 4),
    )

    h_flat, c_next_flat = pl.pallas_call(
        kernel,
        out_shape=(
            jax.ShapeDtypeStruct((B, C_hd, HW), x_cur.dtype),
            jax.ShapeDtypeStruct((B, C_hd, HW), x_cur.dtype),
        ),
        grid_spec=pltpu.PrefetchScalarGridSpec(
            num_scalar_prefetch=0,
            grid=(B,),
            in_specs=[
                pl.BlockSpec((1, Kp, HW), lambda b: (b, 0, 0)),        # patches
                pl.BlockSpec((4 * C_hd, Kp), lambda b: (0, 0)),        # weight
                pl.BlockSpec((4 * C_hd, 1), lambda b: (0, 0)),         # bias
                pl.BlockSpec((1, C_hd, HW), lambda b: (b, 0, 0)),      # c_cur
            ],
            out_specs=[
                pl.BlockSpec((1, C_hd, HW), lambda b: (b, 0, 0)),      # h_next
                pl.BlockSpec((1, C_hd, HW), lambda b: (b, 0, 0)),      # c_next
            ],
        ),
        compiler_params=pltpu.CompilerParams(
            dimension_semantics=("parallel",)),
        cost_estimate=cost,
    )(patches, w_flat, b_col, c_flat)

    # metadata-only reshapes back to NCHW
    return (h_flat.reshape(B, C_hd, H, W),
            c_next_flat.reshape(B, C_hd, H, W))


def _reference_forward(x, h, c, weight, bias, padding=1):
    """Pure-JAX reference mirroring the PyTorch module."""
    xh = jnp.concatenate([x, h], axis=1)
    y = jax.lax.conv_general_dilated(
        xh, weight, window_strides=(1, 1),
        padding=((padding, padding), (padding, padding)),
        dimension_numbers=("NCHW", "OIHW", "NCHW"))
    y = y + bias[None, :, None, None]
    cc_i, cc_f, cc_o, cc_g = jnp.split(y, 4, axis=1)
    i = jax.nn.sigmoid(cc_i)
    f = jax.nn.sigmoid(cc_f)
    o = jax.nn.sigmoid(cc_o)
    g = jnp.tanh(cc_g)
    c_next = f * c + i * g
    h_next = o * jnp.tanh(c_next)
    return h_next, c_next


if __name__ == "__main__":
    # hyper-params
    B, C_in, C_hd, H, W, K, PAD = 2, 4, 32, 16, 16, 3, 1

    key = jax.random.PRNGKey(0)
    k1, k2, k3, k4, k5 = jax.random.split(key, 5)

    x_cur = jax.random.normal(k1, (B, C_in, H, W), dtype=jnp.float32)
    h_cur = jax.random.normal(k2, (B, C_hd, H, W), dtype=jnp.float32)
    c_cur = jax.random.normal(k3, (B, C_hd, H, W), dtype=jnp.float32)

    # deterministic synthetic parameters (PyTorch Conv2d shapes: OIHW + bias)
    weight = 0.05 * jax.random.normal(
        k4, (4 * C_hd, C_in + C_hd, K, K), dtype=jnp.float32)
    bias = 0.05 * jax.random.normal(k5, (4 * C_hd,), dtype=jnp.float32)

    h_ref, c_ref = _reference_forward(x_cur, h_cur, c_cur, weight, bias, PAD)

    # f32 path (default: matches the PyTorch module numerics)
    h_next, c_next = convlstm_cell_forward(
        x_cur, h_cur, c_cur, weight, bias, kernel_size=K, padding=PAD)
    jax.block_until_ready((h_next, c_next))
    np.testing.assert_allclose(np.asarray(h_next), np.asarray(h_ref),
                               rtol=1e-4, atol=1e-4)
    np.testing.assert_allclose(np.asarray(c_next), np.asarray(c_ref),
                               rtol=1e-4, atol=1e-4)

    # bf16 MXU-operand path (v6e/v7x): bf16 matmul inputs, f32 accumulation,
    # f32 gate math -> loosened tolerance per bf16 rounding.
    h_bf, c_bf = convlstm_cell_forward(
        x_cur, h_cur, c_cur, weight, bias, kernel_size=K, padding=PAD,
        compute_dtype=jnp.bfloat16)
    jax.block_until_ready((h_bf, c_bf))
    np.testing.assert_allclose(np.asarray(h_bf), np.asarray(h_ref),
                               rtol=5e-2, atol=5e-2)
    np.testing.assert_allclose(np.asarray(c_bf), np.asarray(c_ref),
                               rtol=5e-2, atol=5e-2)

    print("KERNEL_OK")
</pallas_src>

<mosaic_0001>
module attributes {stable_mosaic.version = 11 : i64} {
  func.func @_convlstm_kernel(%arg0: i32, %arg1: memref<1x384x256xf32, #tpu.memory_space<vmem>>, %arg2: memref<128x384xf32, #tpu.memory_space<vmem>>, %arg3: memref<128x1xf32, #tpu.memory_space<vmem>>, %arg4: memref<1x32x256xf32, #tpu.memory_space<vmem>>, %arg5: memref<1x32x256xf32, #tpu.memory_space<vmem>>, %arg6: memref<1x32x256xf32, #tpu.memory_space<vmem>>) attributes {dimension_semantics = [#tpu.dimension_semantics<parallel>], iteration_bounds = array<i64: 2>, scalar_prefetch = 0 : i64, scratch_operands = 0 : i64, tpu.core_type = #tpu.core_type<tc>, window_params = [{transform_indices = @transform_0, window_bounds = array<i64: 1, 384, 256>}, {pipeline_mode = #tpu.pipeline_mode<synchronous>, transform_indices = @transform_1, window_bounds = array<i64: 128, 384>}, {pipeline_mode = #tpu.pipeline_mode<synchronous>, transform_indices = @transform_2, window_bounds = array<i64: 128, 1>}, {transform_indices = @transform_3, window_bounds = array<i64: 1, 32, 256>}, {transform_indices = @transform_4, window_bounds = array<i64: 1, 32, 256>}, {transform_indices = @transform_5, window_bounds = array<i64: 1, 32, 256>}]} {
    %c0 = arith.constant 0 : index
    %c0_0 = arith.constant 0 : index
    %0 = vector.load %arg2[%c0, %c0_0] : memref<128x384xf32, #tpu.memory_space<vmem>>, vector<128x384xf32>
    %c0_1 = arith.constant 0 : index
    %c0_2 = arith.constant 0 : index
    %c0_3 = arith.constant 0 : index
    %1 = vector.load %arg1[%c0_1, %c0_2, %c0_3] : memref<1x384x256xf32, #tpu.memory_space<vmem>>, vector<1x384x256xf32>
    %2 = vector.shape_cast %1 : vector<1x384x256xf32> to vector<384x256xf32>
    %cst = arith.constant dense<0.000000e+00> : vector<128x256xf32>
    %3 = tpu.matmul %0, %2, %cst {dimension_numbers = #tpu.dot_dimension_numbers<[1], [0], [0], [1], [0, 0, 1, 1], [], []>} : vector<128x384xf32>, vector<384x256xf32>, vector<128x256xf32> -> vector<128x256xf32>
    %c0_4 = arith.constant 0 : index
    %c0_5 = arith.constant 0 : index
    %4 = vector.load %arg3[%c0_4, %c0_5] : memref<128x1xf32, #tpu.memory_space<vmem>>, vector<128x1xf32>
    %5 = vector.broadcast %4 : vector<128x1xf32> to vector<128x256xf32>
    %6 = arith.addf %3, %5 : vector<128x256xf32>
    %7 = tpu.iota {dimensions = array<i32: 0>} : vector<128x256xi32>
    %c96_i32 = arith.constant 96 : i32
    %8 = vector.broadcast %c96_i32 : i32 to vector<128x256xi32>
    %9 = arith.cmpi slt, %7, %8 : vector<128x256xi32>
    %10 = arith.negf %6 : vector<128x256xf32>
    %11 = math.exp %10 : vector<128x256xf32>
    %cst_6 = arith.constant 1.000000e+00 : f32
    %12 = vector.broadcast %cst_6 : f32 to vector<128x256xf32>
    %13 = arith.addf %12, %11 : vector<128x256xf32>
    %14 = arith.divf %12, %13 : vector<128x256xf32>
    %15 = math.tanh %6 : vector<128x256xf32>
    %16 = arith.select %9, %14, %15 : vector<128x256xi1>, vector<128x256xf32>
    %17 = vector.extract_strided_slice %16 {offsets = [0, 0], sizes = [32, 256], strides = [1, 1]} : vector<128x256xf32> to vector<32x256xf32>
    %18 = vector.extract_strided_slice %16 {offsets = [32, 0], sizes = [32, 256], strides = [1, 1]} : vector<128x256xf32> to vector<32x256xf32>
    %19 = vector.extract_strided_slice %16 {offsets = [64, 0], sizes = [32, 256], strides = [1, 1]} : vector<128x256xf32> to vector<32x256xf32>
    %20 = vector.extract_strided_slice %16 {offsets = [96, 0], sizes = [32, 256], strides = [1, 1]} : vector<128x256xf32> to vector<32x256xf32>
    %c0_7 = arith.constant 0 : index
    %c0_8 = arith.constant 0 : index
    %c0_9 = arith.constant 0 : index
    %21 = vector.load %arg4[%c0_7, %c0_8, %c0_9] : memref<1x32x256xf32, #tpu.memory_space<vmem>>, vector<1x32x256xf32>
    %22 = vector.shape_cast %21 : vector<1x32x256xf32> to vector<32x256xf32>
    %23 = arith.mulf %18, %22 : vector<32x256xf32>
    %24 = arith.mulf %17, %20 : vector<32x256xf32>
    %25 = arith.addf %23, %24 : vector<32x256xf32>
    %26 = math.tanh %25 : vector<32x256xf32>
    %27 = arith.mulf %19, %26 : vector<32x256xf32>
    %c0_10 = arith.constant 0 : index
    %c0_11 = arith.constant 0 : index
    %c0_12 = arith.constant 0 : index
    %28 = vector.load %arg6[%c0_10, %c0_11, %c0_12] : memref<1x32x256xf32, #tpu.memory_space<vmem>>, vector<1x32x256xf32>
    %29 = vector.shape_cast %28 : vector<1x32x256xf32> to vector<32x256xf32>
    %30 = vector.shape_cast %25 : vector<32x256xf32> to vector<1x32x256xf32>
    tpu.vector_store %arg6[%c0_10, %c0_11, %c0_12], %30 {strides = array<i32>} : memref<1x32x256xf32, #tpu.memory_space<vmem>>, vector<1x32x256xf32>,
    %c0_13 = arith.constant 0 : index
    %c0_14 = arith.constant 0 : index
    %c0_15 = arith.constant 0 : index
    %31 = vector.load %arg5[%c0_13, %c0_14, %c0_15] : memref<1x32x256xf32, #tpu.memory_space<vmem>>, vector<1x32x256xf32>
    %32 = vector.shape_cast %31 : vector<1x32x256xf32> to vector<32x256xf32>
    %33 = vector.shape_cast %27 : vector<32x256xf32> to vector<1x32x256xf32>
    tpu.vector_store %arg5[%c0_13, %c0_14, %c0_15], %33 {strides = array<i32>} : memref<1x32x256xf32, #tpu.memory_space<vmem>>, vector<1x32x256xf32>,
    return
  }
  func.func @transform_0(%arg0: i32) -> (i32, i32, i32) {
    %c0_i32 = arith.constant 0 : i32
    %c0_i32_0 = arith.constant 0 : i32
    %c0_i32_1 = arith.constant 0 : i32
    return %arg0, %c0_i32, %c0_i32_0 : i32, i32, i32
  }
  func.func @transform_1(%arg0: i32) -> (i32, i32) {
    %c0_i32 = arith.constant 0 : i32
    %c0_i32_0 = arith.constant 0 : i32
    %c0_i32_1 = arith.constant 0 : i32
    return %c0_i32, %c0_i32_0 : i32, i32
  }
  func.func @transform_2(%arg0: i32) -> (i32, i32) {
    %c0_i32 = arith.constant 0 : i32
    %c0_i32_0 = arith.constant 0 : i32
    %c0_i32_1 = arith.constant 0 : i32
    return %c0_i32, %c0_i32_0 : i32, i32
  }
  func.func @transform_3(%arg0: i32) -> (i32, i32, i32) {
    %c0_i32 = arith.constant 0 : i32
    %c0_i32_0 = arith.constant 0 : i32
    %c0_i32_1 = arith.constant 0 : i32
    return %arg0, %c0_i32, %c0_i32_0 : i32, i32, i32
  }
  func.func @transform_4(%arg0: i32) -> (i32, i32, i32) {
    %c0_i32 = arith.constant 0 : i32
    %c0_i32_0 = arith.constant 0 : i32
    %c0_i32_1 = arith.constant 0 : i32
    return %arg0, %c0_i32, %c0_i32_0 : i32, i32, i32
  }
  func.func @transform_5(%arg0: i32) -> (i32, i32, i32) {
    %c0_i32 = arith.constant 0 : i32
    %c0_i32_0 = arith.constant 0 : i32
    %c0_i32_1 = arith.constant 0 : i32
    return %arg0, %c0_i32, %c0_i32_0 : i32, i32, i32
  }
}

</mosaic_0001>

<llo_original>
// kernel: tpu_custom_call.1
$region0: #{tpu_custom_call.1}
  #allocation0 [shape = 'u32[]', space=smem, size = 0x4, offset = 0x4, fixed_abs, tag = 'smem constant byte address 0x4 - core index']
  #allocation1 [shape = 'u32[144,128]{1,0:T(1,128)}', space=vmem, size = 0x12000, scoped, tag = 'internal scratch']
  %s0 = inlined_call_operand.hbm [shape: f32[2,384,256], index: 0, kind: input, shape index: {}]
  %s1 = inlined_call_operand.hbm [shape: f32[128,384], index: 1, kind: input, shape index: {}]
  %s2 = inlined_call_operand.vmem [shape: f32[128,1], index: 2, kind: input, shape index: {}]
  %s3 = inlined_call_operand.vmem [shape: f32[2,32,256], index: 3, kind: input, shape index: {}]
  %s4 = inlined_call_operand.hbm [shape: f32[2,32,256], index: 4, kind: output, shape index: {0}]
  %s5 = inlined_call_operand.hbm [shape: f32[2,32,256], index: 5, kind: output, shape index: {1}]
  %6 = xla_tuple %s4, %s5
  %s7 = sld [smem:[#allocation0]]
  $region65: #{tpu_custom_call.1} parent=0
    _
  %s9 = ssub.s32 1, %s7
  %s10 = scalar_select 0, %s9, %s7
  $region1: #{tpu_custom_call.1} parent=0
    #allocation2 [shape = 'u8[786432]{0}', space=vmem, size = 0xc0000, scoped, tag = 'input window, operand 0']
    #allocation3 [shape = 's32[2]{0}', space=sflag, size = 0x8, scoped, tag = 'scoped memory for tpu_custom_call.1']
    #allocation4 [shape = 's32[2]{0}', space=sflag, size = 0x8, scoped, tag = 'scoped memory for tpu_custom_call.1']
    #allocation5 [shape = 'u8[196608]{0}', space=vmem, size = 0x30000, scoped, tag = 'input window, operand 1, single buffered']
    #allocation6 [shape = 's32[1]{0}', space=sflag, size = 0x4, scoped, tag = 'scoped memory for tpu_custom_call.1']
    #allocation7 [shape = 'u8[65536]{0}', space=vmem, size = 0x10000, scoped, tag = 'output window, operand 0']
    #allocation8 [shape = 'u8[65536]{0}', space=vmem, size = 0x10000, scoped, tag = 'output window, operand 1']
    #allocation9 [shape = 's32[2]{0}', space=sflag, size = 0x8, scoped, tag = 'scoped memory for tpu_custom_call.1']
    %11 = vsyncpa [#allocation3], 0
    %s12 = scalar_lea.sflag [#allocation3], 1
    %13 = vsyncpa %s12, 0
    %14 = vsyncpa [#allocation6], 0
    %15 = vsyncpa [#allocation4], 0
    %s16 = scalar_lea.sflag [#allocation4], 1
    %17 = vsyncpa %s16, 0
    %18 = vsyncpa [#allocation9], 0
    %s19 = scalar_lea.sflag [#allocation9], 1
    %20 = vsyncpa %s19, 0
    loop: start=0, step=1, limit=4
    $region2: #{tpu_custom_call.1} parent=1 // loop_pre_header
      _
    $region3: #{tpu_custom_call.1} parent=1 // loop_header
      %s22 = sphi 0, %s26
      %p23 = scmp.ge.s32.totalorder %s22, 4
      %s32 = sphi 0, %s34
      %s35 = sphi 0, %s32
      %s36 = sphi 0, %s35
      %s52 = sphi 0, %s36
      %s56 = sphi 0, %s56
      %s58 = sphi 0, %s56
      %s59 = sphi 0, %s58
      %s73 = sphi 0, %s59
      %s77 = sphi 0, %s77
      %s79 = sphi 0, %s77
      %s80 = sphi 0, %s79
      %s94 = sphi 0, %s80
      %s100 = sphi 0, %s102
      %s103 = sphi 0, %s100
      %s104 = sphi 0, %s103
      %s120 = sphi 0, %s104
      %s126 = sphi 0, %s128
      %s129 = sphi 0, %s126
      %s130 = sphi 0, %s129
      %s146 = sphi 0, %s130
      %s152 = sphi 0, %s154
      %s155 = sphi 0, %s152
      %s156 = sphi 0, %s155
      %s172 = sphi 0, %s156
    $region4: #{tpu_custom_call.1} parent=1 // loop_header_branch
      %25 = sbr.rel (%p23) target = $region8
    $region5: #{tpu_custom_call.1} parent=1 // loop_body
      %s27 = ssub.s32 %s22, 1
      %s28 = ssub.s32 %s22, 2
      %s29 = sadd.s32 %s22, 1
      %s30 = ssub.s32 %s22, %s29
      %p31 = scmp.eq.s32.totalorder %s30, 0
      %s33 = sadd.s32 %s32, 1
      %s34 = scalar_select %p31, %s32, %s33
      %p37 = pneg %p31
      %p38 = scmp.eq.s32.totalorder %s22, 1
      %p39 = por %p37, %p38
      %p40 = scmp.ne.s32.totalorder %s32, %s35
      %p41 = scmp.eq.s32.totalorder %s22, 0
      %p42 = por %p40, %p41
      %p43 = scmp.ne.s32.totalorder %s32, %s35
      %p44 = scmp.eq.s32.totalorder %s27, 1
      %p45 = por %p43, %p44
      %p46 = scmp.ne.s32.totalorder %s35, %s36
      %p47 = scmp.eq.s32.totalorder %s27, 0
      %p48 = por %p46, %p47
      %p49 = scmp.ne.s32.totalorder %s35, %s36
      %p50 = scmp.eq.s32.totalorder %s28, 1
      %p51 = por %p49, %p50
      %p53 = scmp.ne.s32.totalorder %s36, %s52
      %p54 = scmp.eq.s32.totalorder %s28, 0
      %p55 = por %p53, %p54
      %s57 = sadd.s32 %s56, 1
      %p60 = scmp.eq.s32.totalorder %s22, 1
      %p61 = scmp.ne.s32.totalorder %s56, %s58
      %p62 = scmp.eq.s32.totalorder %s22, 0
      %p63 = por %p61, %p62
      %p64 = scmp.ne.s32.totalorder %s56, %s58
      %p65 = scmp.eq.s32.totalorder %s27, 1
      %p66 = por %p64, %p65
      %p67 = scmp.ne.s32.totalorder %s58, %s59
      %p68 = scmp.eq.s32.totalorder %s27, 0
      %p69 = por %p67, %p68
      %p70 = scmp.ne.s32.totalorder %s58, %s59
      %p71 = scmp.eq.s32.totalorder %s28, 1
      %p72 = por %p70, %p71
      %p74 = scmp.ne.s32.totalorder %s59, %s73
      %p75 = scmp.eq.s32.totalorder %s28, 0
      %p76 = por %p74, %p75
      %s78 = sadd.s32 %s77, 1
      %p81 = scmp.eq.s32.totalorder %s22, 1
      %p82 = scmp.ne.s32.totalorder %s77, %s79
      %p83 = scmp.eq.s32.totalorder %s22, 0
      %p84 = por %p82, %p83
      %p85 = scmp.ne.s32.totalorder %s77, %s79
      %p86 = scmp.eq.s32.totalorder %s27, 1
      %p87 = por %p85, %p86
      %p88 = scmp.ne.s32.totalorder %s79, %s80
      %p89 = scmp.eq.s32.totalorder %s27, 0
      %p90 = por %p88, %p89
      %p91 = scmp.ne.s32.totalorder %s79, %s80
      %p92 = scmp.eq.s32.totalorder %s28, 1
      %p93 = por %p91, %p92
      %p95 = scmp.ne.s32.totalorder %s80, %s94
      %p96 = scmp.eq.s32.totalorder %s28, 0
      %p97 = por %p95, %p96
      %s98 = ssub.s32 %s22, %s29
      %p99 = scmp.eq.s32.totalorder %s98, 0
      %s101 = sadd.s32 %s100, 1
      %s102 = scalar_select %p99, %s100, %s101
      %p105 = pneg %p99
      %p106 = scmp.eq.s32.totalorder %s22, 1
      %p107 = por %p105, %p106
      %p108 = scmp.ne.s32.totalorder %s100, %s103
      %p109 = scmp.eq.s32.totalorder %s22, 0
      %p110 = por %p108, %p109
      %p111 = scmp.ne.s32.totalorder %s100, %s103
      %p112 = scmp.eq.s32.totalorder %s27, 1
      %p113 = por %p111, %p112
      %p114 = scmp.ne.s32.totalorder %s103, %s104
      %p115 = scmp.eq.s32.totalorder %s27, 0
      %p116 = por %p114, %p115
      %p117 = scmp.ne.s32.totalorder %s103, %s104
      %p118 = scmp.eq.s32.totalorder %s28, 1
      %p119 = por %p117, %p118
      %p121 = scmp.ne.s32.totalorder %s104, %s120
      %p122 = scmp.eq.s32.totalorder %s28, 0
      %p123 = por %p121, %p122
      %s124 = ssub.s32 %s22, %s29
      %p125 = scmp.eq.s32.totalorder %s124, 0
      %s127 = sadd.s32 %s126, 1
      %s128 = scalar_select %p125, %s126, %s127
      %p131 = pneg %p125
      %p132 = scmp.eq.s32.totalorder %s22, 1
      %p133 = por %p131, %p132
      %p134 = scmp.ne.s32.totalorder %s126, %s129
      %p135 = scmp.eq.s32.totalorder %s22, 0
      %p136 = por %p134, %p135
      %p137 = scmp.ne.s32.totalorder %s126, %s129
      %p138 = scmp.eq.s32.totalorder %s27, 1
      %p139 = por %p137, %p138
      %p140 = scmp.ne.s32.totalorder %s129, %s130
      %p141 = scmp.eq.s32.totalorder %s27, 0
      %p142 = por %p140, %p141
      %p143 = scmp.ne.s32.totalorder %s129, %s130
      %p144 = scmp.eq.s32.totalorder %s28, 1
      %p145 = por %p143, %p144
      %p147 = scmp.ne.s32.totalorder %s130, %s146
      %p148 = scmp.eq.s32.totalorder %s28, 0
      %p149 = por %p147, %p148
      %s150 = ssub.s32 %s22, %s29
      %p151 = scmp.eq.s32.totalorder %s150, 0
      %s153 = sadd.s32 %s152, 1
      %s154 = scalar_select %p151, %s152, %s153
      %p157 = pneg %p151
      %p158 = scmp.eq.s32.totalorder %s22, 1
      %p159 = por %p157, %p158
      %p160 = scmp.ne.s32.totalorder %s152, %s155
      %p161 = scmp.eq.s32.totalorder %s22, 0
      %p162 = por %p160, %p161
      %p163 = scmp.ne.s32.totalorder %s152, %s155
      %p164 = scmp.eq.s32.totalorder %s27, 1
      %p165 = por %p163, %p164
      %p166 = scmp.ne.s32.totalorder %s155, %s156
      %p167 = scmp.eq.s32.totalorder %s27, 0
      %p168 = por %p166, %p167
      %p169 = scmp.ne.s32.totalorder %s155, %s156
      %p170 = scmp.eq.s32.totalorder %s28, 1
      %p171 = por %p169, %p170
      %p173 = scmp.ne.s32.totalorder %s156, %s172
      %p174 = scmp.eq.s32.totalorder %s28, 0
      %p175 = por %p173, %p174
      %p176 = scmp.le.s32.totalorder 1, %s22
      %p177 = scmp.lt.s32.totalorder %s22, 3
      %p178 = pnand %p176, %p177
      %p179 = pneg %p178
      // Predicated region
      $region9: #{tpu_custom_call.1} parent=5 // pred_check
        _
      $region10: #{tpu_custom_call.1} parent=5 // pred_check_branch
        %181 = sbr.rel (%p178) target = $region12
      $region11: #{tpu_custom_call.1} parent=5 // pred_region
        %s182 = ssub.s32 %s22, 1
        // Predicated region
        $region13: #{tpu_custom_call.1} parent=11 // pred_check
          %p183 = pneg %p69
        $region14: #{tpu_custom_call.1} parent=11 // pred_check_branch
          %185 = sbr.rel (%p183) target = $region16
        $region15: #{tpu_custom_call.1} parent=11 // pred_region
          %s187 = ssub.s32 6144, 6144
          %188 = vsyncadd [#allocation6], %s187
          %s189 = sshll.u32 [#allocation5], 4
          %s190 = int_to_ptr.vmem [resolvable:$true] %s189
          %195 = dma.hbm_to_vmem [thread:$0]  %s1, 6144, %s190, [#allocation6], 384, 384, 24
        $region16: #{tpu_custom_call.1} parent=11 // pred_fallthru
          _
        // Predicated region
        $region17: #{tpu_custom_call.1} parent=11 // pred_check
          %p196 = pneg %p90
        $region18: #{tpu_custom_call.1} parent=11 // pred_check_branch
          %198 = sbr.rel (%p196) target = $region20
        $region19: #{tpu_custom_call.1} parent=11 // pred_region
          _
        $region20: #{tpu_custom_call.1} parent=11 // pred_fallthru
          _
      $region12: #{tpu_custom_call.1} parent=5 // pred_fallthru
        _
      %p199 = scmp.lt.s32.totalorder %s22, 2
      // Predicated region
      $region21: #{tpu_custom_call.1} parent=5 // pred_check
        %p200 = pneg %p199
      $region22: #{tpu_custom_call.1} parent=5 // pred_check_branch
        %202 = sbr.rel (%p200) target = $region24
      $region23: #{tpu_custom_call.1} parent=5 // pred_region
        // Predicated region
        $region25: #{tpu_custom_call.1} parent=23 // pred_check
          %p203 = pneg %p42
        $region26: #{tpu_custom_call.1} parent=23 // pred_check_branch
          %205 = sbr.rel (%p203) target = $region28
        $region27: #{tpu_custom_call.1} parent=23 // pred_region
          %s206 = sand.u32 %s32, 1
          %s207 = scalar_lea.sflag [#allocation3], %s206
          %s208 = sand.u32 %s32, 1
          %s209 = smul.addr %s208, 768
          %s210 = scalar_lea.vmem [#allocation2], %s209
          %s212 = ssub.s32 12288, 12288
          %213 = vsyncadd %s207, %s212
          %s214 = smul.addr %s22, 96
          %s215 = smul.addr %s214, 128
          %s216 = scalar_lea.hbm %s0, %s215
          %s217 = sshll.u32 %s210, 4
          %s218 = int_to_ptr.vmem [resolvable:$true] %s217
          %223 = dma.hbm_to_vmem [thread:$0]  %s216, 12288, %s218, %s207, 256, 256, 16
        $region28: #{tpu_custom_call.1} parent=23 // pred_fallthru
          _
        // Predicated region
        $region29: #{tpu_custom_call.1} parent=23 // pred_check
          %p224 = pneg %p110
        $region30: #{tpu_custom_call.1} parent=23 // pred_check_branch
          %226 = sbr.rel (%p224) target = $region32
        $region31: #{tpu_custom_call.1} parent=23 // pred_region
          %p227 = scmp.lt.s32.totalorder %s22, 1
          %s228 = scalar_select %p227, %s22, 1
          %s229 = smul.addr %s228, 8
          %s230 = smul.addr %s229, 8
          %s231 = scalar_lea.vmem %s3, %s230
        $region32: #{tpu_custom_call.1} parent=23 // pred_fallthru
          _
      $region24: #{tpu_custom_call.1} parent=5 // pred_fallthru
        _
      %p232 = scmp.le.s32.totalorder 1, %s22
      %p233 = scmp.lt.s32.totalorder %s22, 3
      %p234 = pnand %p232, %p233
      %p235 = pneg %p234
      // Predicated region
      $region33: #{tpu_custom_call.1} parent=5 // pred_check
        _
      $region34: #{tpu_custom_call.1} parent=5 // pred_check_branch
        %237 = sbr.rel (%p234) target = $region36
      $region35: #{tpu_custom_call.1} parent=5 // pred_region
        %s238 = ssub.s32 %s22, 1
        %s239 = sand.u32 %s35, 1
        %s240 = scalar_lea.sflag [#allocation3], %s239
        %s241 = sand.u32 %s35, 1
        %s242 = smul.addr %s241, 768
        %s243 = scalar_lea.vmem [#allocation2], %s242
        // Predicated region
        $region37: #{tpu_custom_call.1} parent=35 // pred_check
          %p244 = pneg %p48
        $region38: #{tpu_custom_call.1} parent=35 // pred_check_branch
          %246 = sbr.rel (%p244) target = $region40
        $region39: #{tpu_custom_call.1} parent=35 // pred_region
          %247 = dma.done %s240, 12288
        $region40: #{tpu_custom_call.1} parent=35 // pred_fallthru
          _
        // Predicated region
        $region41: #{tpu_custom_call.1} parent=35 // pred_check
          %p248 = pneg %p69
        $region42: #{tpu_custom_call.1} parent=35 // pred_check_branch
          %250 = sbr.rel (%p248) target = $region44
        $region43: #{tpu_custom_call.1} parent=35 // pred_region
          %251 = dma.done [#allocation6], 6144
        $region44: #{tpu_custom_call.1} parent=35 // pred_fallthru
          _
        %s252 = sand.u32 %s35, 1
        %s253 = scalar_lea.sflag [#allocation3], %s252
        %s254 = sand.u32 %s35, 1
        %s255 = smul.addr %s254, 768
        %s256 = scalar_lea.vmem [#allocation2], %s255
        %p257 = pneg %p48
        %p258 = pneg %p45
        %p259 = pneg %p69
        %p260 = pneg %p66
        %p261 = pneg %p90
        %p262 = pneg %p87
        %p263 = scmp.lt.s32.totalorder %s27, 1
        %s264 = scalar_select %p263, %s27, 1
        %s265 = smul.addr %s264, 8
        %s266 = smul.addr %s265, 8
        %s267 = scalar_lea.vmem %s3, %s266
        %p268 = pneg %p116
        %p269 = pneg %p113
        %p270 = pneg %p142
        %p271 = pneg %p139
        %s272 = sand.u32 %s129, 1
        %s273 = scalar_lea.sflag [#allocation4], %s272
        %s274 = sand.u32 %s129, 1
        %s275 = smul.addr %s274, 64
        %s276 = scalar_lea.vmem [#allocation7], %s275
        %p277 = pneg %p168
        %p278 = pneg %p165
        %s279 = sand.u32 %s155, 1
        %s280 = scalar_lea.sflag [#allocation9], %s279
        %s281 = sand.u32 %s155, 1
        %s282 = smul.addr %s281, 64
        %s283 = scalar_lea.vmem [#allocation8], %s282
        %p284 = scmp.lt.s32.totalorder %s27, 1
        %s285 = scalar_select %p284, %s27, 1
        %s286 = smul.addr %s285, 8
        %s287 = smul.addr %s286, 8
        %s288 = scalar_lea.vmem %s3, %s287
        %v289 = vld [vmem:[#allocation5] sm:$0xff]
        %v290 = vld [vmem:[#allocation5 + $0x8] sm:$0xff]
        %v291 = vld [vmem:[#allocation5 + $0x10] sm:$0xff]
        %v292 = vld [vmem:[#allocation5 + $0x18] sm:$0xff]
        %v293 = vld [vmem:[#allocation5 + $0x20] sm:$0xff]
        %v294 = vld [vmem:[#allocation5 + $0x28] sm:$0xff]
        %v295 = vld [vmem:[#allocation5 + $0x30] sm:$0xff]
        %v296 = vld [vmem:[#allocation5 + $0x38] sm:$0xff]
        %v297 = vld [vmem:[#allocation5 + $0x40] sm:$0xff]
        %v298 = vld [vmem:[#allocation5 + $0x48] sm:$0xff]
        %v299 = vld [vmem:[#allocation5 + $0x50] sm:$0xff]
        %v300 = vld [vmem:[#allocation5 + $0x58] sm:$0xff]
        %v301 = vld [vmem:[#allocation5 + $0x60] sm:$0xff]
        %v302 = vld [vmem:[#allocation5 + $0x68] sm:$0xff]
        %v303 = vld [vmem:[#allocation5 + $0x70] sm:$0xff]
        %v304 = vld [vmem:[#allocation5 + $0x78] sm:$0xff]
        %v305 = vld [vmem:[#allocation5 + $0x80] sm:$0xff]
        %v306 = vld [vmem:[#allocation5 + $0x88] sm:$0xff]
        %v307 = vld [vmem:[#allocation5 + $0x90] sm:$0xff]
        %v308 = vld [vmem:[#allocation5 + $0x98] sm:$0xff]
        %v309 = vld [vmem:[#allocation5 + $0xa0] sm:$0xff]
        %v310 = vld [vmem:[#allocation5 + $0xa8] sm:$0xff]
        %v311 = vld [vmem:[#allocation5 + $0xb0] sm:$0xff]
        %v312 = vld [vmem:[#allocation5 + $0xb8] sm:$0xff]
        %v313 = vld [vmem:[#allocation5 + $0xc0] sm:$0xff]
        %v314 = vld [vmem:[#allocation5 + $0xc8] sm:$0xff]
        %v315 = vld [vmem:[#allocation5 + $0xd0] sm:$0xff]
        %v316 = vld [vmem:[#allocation5 + $0xd8] sm:$0xff]
        %v317 = vld [vmem:[#allocation5 + $0xe0] sm:$0xff]
        %v318 = vld [vmem:[#allocation5 + $0xe8] sm:$0xff]
        %v319 = vld [vmem:[#allocation5 + $0xf0] sm:$0xff]
        %v320 = vld [vmem:[#allocation5 + $0xf8] sm:$0xff]
        %v321 = vld [vmem:[#allocation5 + $0x100] sm:$0xff]
        %v322 = vld [vmem:[#allocation5 + $0x108] sm:$0xff]
        %v323 = vld [vmem:[#allocation5 + $0x110] sm:$0xff]
        %v324 = vld [vmem:[#allocation5 + $0x118] sm:$0xff]
        %v325 = vld [vmem:[#allocation5 + $0x120] sm:$0xff]
        %v326 = vld [vmem:[#allocation5 + $0x128] sm:$0xff]
        %v327 = vld [vmem:[#allocation5 + $0x130] sm:$0xff]
        %v328 = vld [vmem:[#allocation5 + $0x138] sm:$0xff]
        %v329 = vld [vmem:[#allocation5 + $0x140] sm:$0xff]
        %v330 = vld [vmem:[#allocation5 + $0x148] sm:$0xff]
        %v331 = vld [vmem:[#allocation5 + $0x150] sm:$0xff]
        %v332 = vld [vmem:[#allocation5 + $0x158] sm:$0xff]
        %v333 = vld [vmem:[#allocation5 + $0x160] sm:$0xff]
        %v334 = vld [vmem:[#allocation5 + $0x168] sm:$0xff]
        %v335 = vld [vmem:[#allocation5 + $0x170] sm:$0xff]
        %v336 = vld [vmem:[#allocation5 + $0x178] sm:$0xff]
        %v337 = vld [vmem:[%s243] sm:$0xff]
        %v338 = vld [vmem:[%s243 + $0x8] sm:$0xff]
        %v339 = vld [vmem:[%s243 + $0x10] sm:$0xff]
        %v340 = vld [vmem:[%s243 + $0x18] sm:$0xff]
        %v341 = vld [vmem:[%s243 + $0x20] sm:$0xff]
        %v342 = vld [vmem:[%s243 + $0x28] sm:$0xff]
        %v343 = vld [vmem:[%s243 + $0x30] sm:$0xff]
        %v344 = vld [vmem:[%s243 + $0x38] sm:$0xff]
        %v345 = vld [vmem:[%s243 + $0x40] sm:$0xff]
        %v346 = vld [vmem:[%s243 + $0x48] sm:$0xff]
        %v347 = vld [vmem:[%s243 + $0x50] sm:$0xff]
        %v348 = vld [vmem:[%s243 + $0x58] sm:$0xff]
        %v349 = vld [vmem:[%s243 + $0x60] sm:$0xff]
        %v350 = vld [vmem:[%s243 + $0x68] sm:$0xff]
        %v351 = vld [vmem:[%s243 + $0x70] sm:$0xff]
        %v352 = vld [vmem:[%s243 + $0x78] sm:$0xff]
        %v353 = vld [vmem:[%s243 + $0x80] sm:$0xff]
        %v354 = vld [vmem:[%s243 + $0x88] sm:$0xff]
        %v355 = vld [vmem:[%s243 + $0x90] sm:$0xff]
        %v356 = vld [vmem:[%s243 + $0x98] sm:$0xff]
        %v357 = vld [vmem:[%s243 + $0xa0] sm:$0xff]
        %v358 = vld [vmem:[%s243 + $0xa8] sm:$0xff]
        %v359 = vld [vmem:[%s243 + $0xb0] sm:$0xff]
        %v360 = vld [vmem:[%s243 + $0xb8] sm:$0xff]
        %v361 = vld [vmem:[%s243 + $0xc0] sm:$0xff]
        %v362 = vld [vmem:[%s243 + $0xc8] sm:$0xff]
        %v363 = vld [vmem:[%s243 + $0xd0] sm:$0xff]
        %v364 = vld [vmem:[%s243 + $0xd8] sm:$0xff]
        %v365 = vld [vmem:[%s243 + $0xe0] sm:$0xff]
        %v366 = vld [vmem:[%s243 + $0xe8] sm:$0xff]
        %v367 = vld [vmem:[%s243 + $0xf0] sm:$0xff]
        %v368 = vld [vmem:[%s243 + $0xf8] sm:$0xff]
        %v369 = vld [vmem:[%s243 + $0x100] sm:$0xff]
        %v370 = vld [vmem:[%s243 + $0x108] sm:$0xff]
        %v371 = vld [vmem:[%s243 + $0x110] sm:$0xff]
        %v372 = vld [vmem:[%s243 + $0x118] sm:$0xff]
        %v373 = vld [vmem:[%s243 + $0x120] sm:$0xff]
        %v374 = vld [vmem:[%s243 + $0x128] sm:$0xff]
        %v375 = vld [vmem:[%s243 + $0x130] sm:$0xff]
        %v376 = vld [vmem:[%s243 + $0x138] sm:$0xff]
        %v377 = vld [vmem:[%s243 + $0x140] sm:$0xff]
        %v378 = vld [vmem:[%s243 + $0x148] sm:$0xff]
        %v379 = vld [vmem:[%s243 + $0x150] sm:$0xff]
        %v380 = vld [vmem:[%s243 + $0x158] sm:$0xff]
        %v381 = vld [vmem:[%s243 + $0x160] sm:$0xff]
        %v382 = vld [vmem:[%s243 + $0x168] sm:$0xff]
        %v383 = vld [vmem:[%s243 + $0x170] sm:$0xff]
        %v384 = vld [vmem:[%s243 + $0x178] sm:$0xff]
        %v385 = vld [vmem:[%s243 + $0x180] sm:$0xff]
        %v386 = vld [vmem:[%s243 + $0x188] sm:$0xff]
        %v387 = vld [vmem:[%s243 + $0x190] sm:$0xff]
        %v388 = vld [vmem:[%s243 + $0x198] sm:$0xff]
        %v389 = vld [vmem:[%s243 + $0x1a0] sm:$0xff]
        %v390 = vld [vmem:[%s243 + $0x1a8] sm:$0xff]
        %v391 = vld [vmem:[%s243 + $0x1b0] sm:$0xff]
        %v392 = vld [vmem:[%s243 + $0x1b8] sm:$0xff]
        %v393 = vld [vmem:[%s243 + $0x1c0] sm:$0xff]
        %v394 = vld [vmem:[%s243 + $0x1c8] sm:$0xff]
        %v395 = vld [vmem:[%s243 + $0x1d0] sm:$0xff]
        %v396 = vld [vmem:[%s243 + $0x1d8] sm:$0xff]
        %v397 = vld [vmem:[%s243 + $0x1e0] sm:$0xff]
        %v398 = vld [vmem:[%s243 + $0x1e8] sm:$0xff]
        %v399 = vld [vmem:[%s243 + $0x1f0] sm:$0xff]
        %v400 = vld [vmem:[%s243 + $0x1f8] sm:$0xff]
        %v401 = vld [vmem:[%s243 + $0x200] sm:$0xff]
        %v402 = vld [vmem:[%s243 + $0x208] sm:$0xff]
        %v403 = vld [vmem:[%s243 + $0x210] sm:$0xff]
        %v404 = vld [vmem:[%s243 + $0x218] sm:$0xff]
        %v405 = vld [vmem:[%s243 + $0x220] sm:$0xff]
        %v406 = vld [vmem:[%s243 + $0x228] sm:$0xff]
        %v407 = vld [vmem:[%s243 + $0x230] sm:$0xff]
        %v408 = vld [vmem:[%s243 + $0x238] sm:$0xff]
        %v409 = vld [vmem:[%s243 + $0x240] sm:$0xff]
        %v410 = vld [vmem:[%s243 + $0x248] sm:$0xff]
        %v411 = vld [vmem:[%s243 + $0x250] sm:$0xff]
        %v412 = vld [vmem:[%s243 + $0x258] sm:$0xff]
        %v413 = vld [vmem:[%s243 + $0x260] sm:$0xff]
        %v414 = vld [vmem:[%s243 + $0x268] sm:$0xff]
        %v415 = vld [vmem:[%s243 + $0x270] sm:$0xff]
        %v416 = vld [vmem:[%s243 + $0x278] sm:$0xff]
        %v417 = vld [vmem:[%s243 + $0x280] sm:$0xff]
        %v418 = vld [vmem:[%s243 + $0x288] sm:$0xff]
        %v419 = vld [vmem:[%s243 + $0x290] sm:$0xff]
        %v420 = vld [vmem:[%s243 + $0x298] sm:$0xff]
        %v421 = vld [vmem:[%s243 + $0x2a0] sm:$0xff]
        %v422 = vld [vmem:[%s243 + $0x2a8] sm:$0xff]
        %v423 = vld [vmem:[%s243 + $0x2b0] sm:$0xff]
        %v424 = vld [vmem:[%s243 + $0x2b8] sm:$0xff]
        %v425 = vld [vmem:[%s243 + $0x2c0] sm:$0xff]
        %v426 = vld [vmem:[%s243 + $0x2c8] sm:$0xff]
        %v427 = vld [vmem:[%s243 + $0x2d0] sm:$0xff]
        %v428 = vld [vmem:[%s243 + $0x2d8] sm:$0xff]
        %v429 = vld [vmem:[%s243 + $0x2e0] sm:$0xff]
        %v430 = vld [vmem:[%s243 + $0x2e8] sm:$0xff]
        %v431 = vld [vmem:[%s243 + $0x2f0] sm:$0xff]
        %v432 = vld [vmem:[%s243 + $0x2f8] sm:$0xff]
        %v433 = vld [vmem:[%s2] sm:$0xff]
        %v434 = vld [vmem:[%s2 + $0x8] sm:$0xff]
        %v435 = vld [vmem:[%s2 + $0x10] sm:$0xff]
        %v436 = vld [vmem:[%s2 + $0x18] sm:$0xff]
        %v437 = vld [vmem:[%s2 + $0x20] sm:$0xff]
        %v438 = vld [vmem:[%s2 + $0x28] sm:$0xff]
        %v439 = vld [vmem:[%s2 + $0x30] sm:$0xff]
        %v440 = vld [vmem:[%s2 + $0x38] sm:$0xff]
        %v441 = vld [vmem:[%s2 + $0x40] sm:$0xff]
        %v442 = vld [vmem:[%s2 + $0x48] sm:$0xff]
        %v443 = vld [vmem:[%s2 + $0x50] sm:$0xff]
        %v444 = vld [vmem:[%s2 + $0x58] sm:$0xff]
        %v445 = vld [vmem:[%s2 + $0x60] sm:$0xff]
        %v446 = vld [vmem:[%s2 + $0x68] sm:$0xff]
        %v447 = vld [vmem:[%s2 + $0x70] sm:$0xff]
        %v448 = vld [vmem:[%s2 + $0x78] sm:$0xff]
        %450 = vset.pattern.permute.xlu0 0
        %451 = vperm.xlu0 %450, %v433
        %v452 = vpop.permute.xlu0 %451
        %455 = vset.pattern.permute.xlu0 0
        %456 = vperm.xlu0 %455, %v434
        %v457 = vpop.permute.xlu0 %456
        %460 = vset.pattern.permute.xlu0 0
        %461 = vperm.xlu0 %460, %v435
        %v462 = vpop.permute.xlu0 %461
        %465 = vset.pattern.permute.xlu0 0
        %466 = vperm.xlu0 %465, %v436
        %v467 = vpop.permute.xlu0 %466
        %470 = vset.pattern.permute.xlu0 0
        %471 = vperm.xlu0 %470, %v437
        %v472 = vpop.permute.xlu0 %471
        %475 = vset.pattern.permute.xlu0 0
        %476 = vperm.xlu0 %475, %v438
        %v477 = vpop.permute.xlu0 %476
        %480 = vset.pattern.permute.xlu0 0
        %481 = vperm.xlu0 %480, %v439
        %v482 = vpop.permute.xlu0 %481
        %485 = vset.pattern.permute.xlu0 0
        %486 = vperm.xlu0 %485, %v440
        %v487 = vpop.permute.xlu0 %486
        %490 = vset.pattern.permute.xlu0 0
        %491 = vperm.xlu0 %490, %v441
        %v492 = vpop.permute.xlu0 %491
        %495 = vset.pattern.permute.xlu0 0
        %496 = vperm.xlu0 %495, %v442
        %v497 = vpop.permute.xlu0 %496
        %500 = vset.pattern.permute.xlu0 0
        %501 = vperm.xlu0 %500, %v443
        %v502 = vpop.permute.xlu0 %501
        %505 = vset.pattern.permute.xlu0 0
        %506 = vperm.xlu0 %505, %v444
        %v507 = vpop.permute.xlu0 %506
        %510 = vset.pattern.permute.xlu0 0
        %511 = vperm.xlu0 %510, %v445
        %v512 = vpop.permute.xlu0 %511
        %515 = vset.pattern.permute.xlu0 0
        %516 = vperm.xlu0 %515, %v446
        %v517 = vpop.permute.xlu0 %516
        %520 = vset.pattern.permute.xlu0 0
        %521 = vperm.xlu0 %520, %v447
        %v522 = vpop.permute.xlu0 %521
        %525 = vset.pattern.permute.xlu0 0
        %526 = vperm.xlu0 %525, %v448
        %v527 = vpop.permute.xlu0 %526
        %529 = vmatprep.subr.mxu0 %v338
        %530 = vmatpush1.msra.mxu0 %v337
        %531 = vmatprep.subr.mxu0 %v340
        %532 = vmatpush1.msra.mxu0 %v339
        %533 = vmatprep.subr.mxu0 %v342
        %534 = vmatpush1.msra.mxu0 %v341
        %535 = vmatprep.subr.mxu0 %v344
        %536 = vmatpush1.msra.mxu0 %v343
        %537 = vmatprep.subr.mxu0 %v346
        %538 = vmatpush1.msra.mxu0 %v345
        %539 = vmatprep.subr.mxu0 %v348
        %540 = vmatpush1.msra.mxu0 %v347
        %541 = vmatprep.subr.mxu0 %v350
        %542 = vmatpush1.msra.mxu0 %v349
        %543 = vmatprep.subr.mxu0 %v352
        %544 = vmatpush1.msra.mxu0 %v351
        %545 = vmatprep.subr.mxu0 %v354
        %546 = vmatpush1.msra.mxu0 %v353
        %547 = vmatprep.subr.mxu0 %v356
        %548 = vmatpush1.msra.mxu0 %v355
        %549 = vmatprep.subr.mxu0 %v358
        %550 = vmatpush1.msra.mxu0 %v357
        %551 = vmatprep.subr.mxu0 %v360
        %552 = vmatpush1.msra.mxu0 %v359
        %553 = vmatprep.subr.mxu0 %v362
        %554 = vmatpush1.msra.mxu0 %v361
        %555 = vmatprep.subr.mxu0 %v364
        %556 = vmatpush1.msra.mxu0 %v363
        %557 = vmatprep.subr.mxu0 %v366
        %558 = vmatpush1.msra.mxu0 %v365
        %559 = vmatprep.subr.mxu0 %v368
        %560 = vmatpush1.msra.mxu0 %v367
        %561 = vmatprep.subr.mxu0 %v370
        %562 = vmatpush1.msra.mxu0 %v369
        %563 = vmatprep.subr.mxu0 %v372
        %564 = vmatpush1.msra.mxu0 %v371
        %565 = vmatprep.subr.mxu0 %v374
        %566 = vmatpush1.msra.mxu0 %v373
        %567 = vmatprep.subr.mxu0 %v376
        %568 = vmatpush1.msra.mxu0 %v375
        %569 = vmatprep.subr.mxu0 %v378
        %570 = vmatpush1.msra.mxu0 %v377
        %571 = vmatprep.subr.mxu0 %v380
        %572 = vmatpush1.msra.mxu0 %v379
        %573 = vmatprep.subr.mxu0 %v382
        %574 = vmatpush1.msra.mxu0 %v381
        %575 = vmatprep.subr.mxu0 %v384
        %576 = vmatpush1.msra.mxu0 %v383
        %577 = vmatprep.subr.mxu0 %v386
        %578 = vmatpush1.msra.mxu0 %v385
        %579 = vmatprep.subr.mxu0 %v388
        %580 = vmatpush1.msra.mxu0 %v387
        %581 = vmatprep.subr.mxu0 %v390
        %582 = vmatpush1.msra.mxu0 %v389
        %583 = vmatprep.subr.mxu0 %v392
        %584 = vmatpush1.msra.mxu0 %v391
        %585 = vmatprep.subr.mxu0 %v394
        %586 = vmatpush1.msra.mxu0 %v393
        %587 = vmatprep.subr.mxu0 %v396
        %588 = vmatpush1.msra.mxu0 %v395
        %589 = vmatprep.subr.mxu0 %v398
        %590 = vmatpush1.msra.mxu0 %v397
        %591 = vmatprep.subr.mxu0 %v400
        %592 = vmatpush1.msra.mxu0 %v399
        %593 = vmatprep.mubr.f32.mxu0 %v290
        %594 = vmatmul.mubr.f32.gmra.mrb[0].mxu0 %v289
        %v595 = vpop.f32.mrb[0].mxu0
        %v596 = vadd.f32 %v452, %v595
        %v597 = vpop.f32.mrb[0].mxu0
        %v598 = vadd.f32 %v452, %v597
        %599 = vmatprep.mubr.f32.mxu0 %v293
        %600 = vmatmul.mubr.f32.gmra.mrb[0].mxu0 %v292
        %v601 = vpop.f32.mrb[0].mxu0
        %v602 = vadd.f32 %v457, %v601
        %v603 = vpop.f32.mrb[0].mxu0
        %v604 = vadd.f32 %v457, %v603
        %605 = vmatprep.mubr.f32.mxu0 %v296
        %606 = vmatmul.mubr.f32.gmra.mrb[0].mxu0 %v295
        %v607 = vpop.f32.mrb[0].mxu0
        %v608 = vadd.f32 %v462, %v607
        %v609 = vpop.f32.mrb[0].mxu0
        %v610 = vadd.f32 %v462, %v609
        %611 = vmatprep.mubr.f32.mxu0 %v299
        %612 = vmatmul.mubr.f32.gmra.mrb[0].mxu0 %v298
        %v613 = vpop.f32.mrb[0].mxu0
        %v614 = vadd.f32 %v467, %v613
        %v615 = vpop.f32.mrb[0].mxu0
        %v616 = vadd.f32 %v467, %v615
        %617 = vmatprep.mubr.f32.mxu0 %v302
        %618 = vmatmul.mubr.f32.gmra.mrb[0].mxu0 %v301
        %v619 = vpop.f32.mrb[0].mxu0
        %v620 = vadd.f32 %v472, %v619
        %v621 = vpop.f32.mrb[0].mxu0
        %v622 = vadd.f32 %v472, %v621
        %623 = vmatprep.mubr.f32.mxu0 %v305
        %624 = vmatmul.mubr.f32.gmra.mrb[0].mxu0 %v304
        %v625 = vpop.f32.mrb[0].mxu0
        %v626 = vadd.f32 %v477, %v625
        %v627 = vpop.f32.mrb[0].mxu0
        %v628 = vadd.f32 %v477, %v627
        %629 = vmatprep.mubr.f32.mxu0 %v308
        %630 = vmatmul.mubr.f32.gmra.mrb[0].mxu0 %v307
        %v631 = vpop.f32.mrb[0].mxu0
        %v632 = vadd.f32 %v482, %v631
        %v633 = vpop.f32.mrb[0].mxu0
        %v634 = vadd.f32 %v482, %v633
        %635 = vmatprep.mubr.f32.mxu0 %v311
        %636 = vmatmul.mubr.f32.gmra.mrb[0].mxu0 %v310
        %v637 = vpop.f32.mrb[0].mxu0
        %v638 = vadd.f32 %v487, %v637
        %v639 = vpop.f32.mrb[0].mxu0
        %v640 = vadd.f32 %v487, %v639
        %641 = vmatprep.mubr.f32.mxu0 %v314
        %642 = vmatmul.mubr.f32.gmra.mrb[0].mxu0 %v313
        %v643 = vpop.f32.mrb[0].mxu0
        %v644 = vadd.f32 %v492, %v643
        %v645 = vpop.f32.mrb[0].mxu0
        %v646 = vadd.f32 %v492, %v645
        %647 = vmatprep.mubr.f32.mxu0 %v317
        %648 = vmatmul.mubr.f32.gmra.mrb[0].mxu0 %v316
        %v649 = vpop.f32.mrb[0].mxu0
        %v650 = vadd.f32 %v497, %v649
        %v651 = vpop.f32.mrb[0].mxu0
        %v652 = vadd.f32 %v497, %v651
        %653 = vmatprep.mubr.f32.mxu0 %v320
        %654 = vmatmul.mubr.f32.gmra.mrb[0].mxu0 %v319
        %v655 = vpop.f32.mrb[0].mxu0
        %v656 = vadd.f32 %v502, %v655
        %v657 = vpop.f32.mrb[0].mxu0
        %v658 = vadd.f32 %v502, %v657
        %659 = vmatprep.mubr.f32.mxu0 %v323
        %660 = vmatmul.mubr.f32.gmra.mrb[0].mxu0 %v322
        %v661 = vpop.f32.mrb[0].mxu0
        %v662 = vadd.f32 %v507, %v661
        %v663 = vpop.f32.mrb[0].mxu0
        %v664 = vadd.f32 %v507, %v663
        %665 = vmatprep.mubr.f32.mxu0 %v326
        %666 = vmatmul.mubr.f32.gmra.mrb[0].mxu0 %v325
        %v667 = vpop.f32.mrb[0].mxu0
        %v668 = vadd.f32 %v512, %v667
        %v669 = vpop.f32.mrb[0].mxu0
        %v670 = vadd.f32 %v512, %v669
        %671 = vmatprep.mubr.f32.mxu0 %v329
        %672 = vmatmul.mubr.f32.gmra.mrb[0].mxu0 %v328
        %v673 = vpop.f32.mrb[0].mxu0
        %v674 = vadd.f32 %v517, %v673
        %v675 = vpop.f32.mrb[0].mxu0
        %v676 = vadd.f32 %v517, %v675
        %677 = vmatprep.mubr.f32.mxu0 %v332
        %678 = vmatmul.mubr.f32.gmra.mrb[0].mxu0 %v331
        %v679 = vpop.f32.mrb[0].mxu0
        %v680 = vadd.f32 %v522, %v679
        %v681 = vpop.f32.mrb[0].mxu0
        %v682 = vadd.f32 %v522, %v681
        %683 = vmatprep.mubr.f32.mxu0 %v335
        %684 = vmatmul.mubr.f32.gmra.mrb[0].mxu0 %v334
        %v685 = vpop.f32.mrb[0].mxu0
        %v686 = vadd.f32 %v527, %v685
        %v687 = vpop.f32.mrb[0].mxu0
        %v688 = vadd.f32 %v527, %v687
        %689 = vdwg.mxu0
        %690 = vmatprep.subr.mxu0 %v402
        %691 = vmatpush1.msra.mxu0 %v401
        %692 = vmatprep.subr.mxu0 %v404
        %693 = vmatpush1.msra.mxu0 %v403
        %694 = vmatprep.subr.mxu0 %v406
        %695 = vmatpush1.msra.mxu0 %v405
        %696 = vmatprep.subr.mxu0 %v408
        %697 = vmatpush1.msra.mxu0 %v407
        %698 = vmatprep.subr.mxu0 %v410
        %699 = vmatpush1.msra.mxu0 %v409
        %700 = vmatprep.subr.mxu0 %v412
        %701 = vmatpush1.msra.mxu0 %v411
        %702 = vmatprep.subr.mxu0 %v414
        %703 = vmatpush1.msra.mxu0 %v413
        %704 = vmatprep.subr.mxu0 %v416
        %705 = vmatpush1.msra.mxu0 %v415
        %706 = vmatprep.subr.mxu0 %v418
        %707 = vmatpush1.msra.mxu0 %v417
        %708 = vmatprep.subr.mxu0 %v420
        %709 = vmatpush1.msra.mxu0 %v419
        %710 = vmatprep.subr.mxu0 %v422
        %711 = vmatpush1.msra.mxu0 %v421
        %712 = vmatprep.subr.mxu0 %v424
        %713 = vmatpush1.msra.mxu0 %v423
        %714 = vmatprep.subr.mxu0 %v426
        %715 = vmatpush1.msra.mxu0 %v425
        %716 = vmatprep.subr.mxu0 %v428
        %717 = vmatpush1.msra.mxu0 %v427
        %718 = vmatprep.subr.mxu0 %v430
        %719 = vmatpush1.msra.mxu0 %v429
        %720 = vmatprep.subr.mxu0 %v432
        %721 = vmatpush1.msra.mxu0 %v431
        %722 = vmatprep.subr.mxu0 0.0
        %723 = vmatpush1.msra.mxu0 0.0
        %724 = vmatprep.subr.mxu0 0.0
        %725 = vmatpush1.msra.mxu0 0.0
        %726 = vmatprep.subr.mxu0 0.0
        %727 = vmatpush1.msra.mxu0 0.0
        %728 = vmatprep.subr.mxu0 0.0
        %729 = vmatpush1.msra.mxu0 0.0
        %730 = vmatprep.subr.mxu0 0.0
        %731 = vmatpush1.msra.mxu0 0.0
        %732 = vmatprep.subr.mxu0 0.0
        %733 = vmatpush1.msra.mxu0 0.0
        %734 = vmatprep.subr.mxu0 0.0
        %735 = vmatpush1.msra.mxu0 0.0
        %736 = vmatprep.subr.mxu0 0.0
        %737 = vmatpush1.msra.mxu0 0.0
        %738 = vmatprep.subr.mxu0 0.0
        %739 = vmatpush1.msra.mxu0 0.0
        %740 = vmatprep.subr.mxu0 0.0
        %741 = vmatpush1.msra.mxu0 0.0
        %742 = vmatprep.subr.mxu0 0.0
        %743 = vmatpush1.msra.mxu0 0.0
        %744 = vmatprep.subr.mxu0 0.0
        %745 = vmatpush1.msra.mxu0 0.0
        %746 = vmatprep.subr.mxu0 0.0
        %747 = vmatpush1.msra.mxu0 0.0
        %748 = vmatprep.subr.mxu0 0.0
        %749 = vmatpush1.msra.mxu0 0.0
        %750 = vmatprep.subr.mxu0 0.0
        %751 = vmatpush1.msra.mxu0 0.0
        %752 = vmatprep.subr.mxu0 0.0
        %753 = vmatpush1.msra.mxu0 0.0
        %754 = vmatprep.mubr.f32.mxu0 0.0
        %755 = vmatmul.mubr.f32.gmra.mrb[0].mxu0 %v291
        %v756 = vpop.f32.mrb[0].mxu0
        %v757 = vadd.f32 %v596, %v756
        %v758 = vpop.f32.mrb[0].mxu0
        %v759 = vadd.f32 %v598, %v758
        %760 = vmatprep.mubr.f32.mxu0 0.0
        %761 = vmatmul.mubr.f32.gmra.mrb[0].mxu0 %v294
        %v762 = vpop.f32.mrb[0].mxu0
        %v763 = vadd.f32 %v602, %v762
        %v764 = vpop.f32.mrb[0].mxu0
        %v765 = vadd.f32 %v604, %v764
        %766 = vmatprep.mubr.f32.mxu0 0.0
        %767 = vmatmul.mubr.f32.gmra.mrb[0].mxu0 %v297
        %v768 = vpop.f32.mrb[0].mxu0
        %v769 = vadd.f32 %v608, %v768
        %v770 = vpop.f32.mrb[0].mxu0
        %v771 = vadd.f32 %v610, %v770
        %772 = vmatprep.mubr.f32.mxu0 0.0
        %773 = vmatmul.mubr.f32.gmra.mrb[0].mxu0 %v300
        %v774 = vpop.f32.mrb[0].mxu0
        %v775 = vadd.f32 %v614, %v774
        %v776 = vpop.f32.mrb[0].mxu0
        %v777 = vadd.f32 %v616, %v776
        %778 = vmatprep.mubr.f32.mxu0 0.0
        %779 = vmatmul.mubr.f32.gmra.mrb[0].mxu0 %v303
        %v780 = vpop.f32.mrb[0].mxu0
        %v781 = vadd.f32 %v620, %v780
        %v782 = vpop.f32.mrb[0].mxu0
        %v783 = vadd.f32 %v622, %v782
        %784 = vmatprep.mubr.f32.mxu0 0.0
        %785 = vmatmul.mubr.f32.gmra.mrb[0].mxu0 %v306
        %v786 = vpop.f32.mrb[0].mxu0
        %v787 = vadd.f32 %v626, %v786
        %v788 = vpop.f32.mrb[0].mxu0
        %v789 = vadd.f32 %v628, %v788
        %790 = vmatprep.mubr.f32.mxu0 0.0
        %791 = vmatmul.mubr.f32.gmra.mrb[0].mxu0 %v309
        %v792 = vpop.f32.mrb[0].mxu0
        %v793 = vadd.f32 %v632, %v792
        %v794 = vpop.f32.mrb[0].mxu0
        %v795 = vadd.f32 %v634, %v794
        %796 = vmatprep.mubr.f32.mxu0 0.0
        %797 = vmatmul.mubr.f32.gmra.mrb[0].mxu0 %v312
        %v798 = vpop.f32.mrb[0].mxu0
        %v799 = vadd.f32 %v638, %v798
        %v800 = vpop.f32.mrb[0].mxu0
        %v801 = vadd.f32 %v640, %v800
        %802 = vmatprep.mubr.f32.mxu0 0.0
        %803 = vmatmul.mubr.f32.gmra.mrb[0].mxu0 %v315
        %v804 = vpop.f32.mrb[0].mxu0
        %v805 = vadd.f32 %v644, %v804
        %v806 = vpop.f32.mrb[0].mxu0
        %v807 = vadd.f32 %v646, %v806
        %808 = vmatprep.mubr.f32.mxu0 0.0
        %809 = vmatmul.mubr.f32.gmra.mrb[0].mxu0 %v318
        %v810 = vpop.f32.mrb[0].mxu0
        %v811 = vadd.f32 %v650, %v810
        %v812 = vpop.f32.mrb[0].mxu0
        %v813 = vadd.f32 %v652, %v812
        %814 = vmatprep.mubr.f32.mxu0 0.0
        %815 = vmatmul.mubr.f32.gmra.mrb[0].mxu0 %v321
        %v816 = vpop.f32.mrb[0].mxu0
        %v817 = vadd.f32 %v656, %v816
        %v818 = vpop.f32.mrb[0].mxu0
        %v819 = vadd.f32 %v658, %v818
        %820 = vmatprep.mubr.f32.mxu0 0.0
        %821 = vmatmul.mubr.f32.gmra.mrb[0].mxu0 %v324
        %v822 = vpop.f32.mrb[0].mxu0
        %v823 = vadd.f32 %v662, %v822
        %v824 = vpop.f32.mrb[0].mxu0
        %v825 = vadd.f32 %v664, %v824
        %826 = vmatprep.mubr.f32.mxu0 0.0
        %827 = vmatmul.mubr.f32.gmra.mrb[0].mxu0 %v327
        %v828 = vpop.f32.mrb[0].mxu0
        %v829 = vadd.f32 %v668, %v828
        %v830 = vpop.f32.mrb[0].mxu0
        %v831 = vadd.f32 %v670, %v830
        %832 = vmatprep.mubr.f32.mxu0 0.0
        %833 = vmatmul.mubr.f32.gmra.mrb[0].mxu0 %v330
        %v834 = vpop.f32.mrb[0].mxu0
        %v835 = vadd.f32 %v674, %v834
        %v836 = vpop.f32.mrb[0].mxu0
        %v837 = vadd.f32 %v676, %v836
        %838 = vmatprep.mubr.f32.mxu0 0.0
        %839 = vmatmul.mubr.f32.gmra.mrb[0].mxu0 %v333
        %v840 = vpop.f32.mrb[0].mxu0
        %v841 = vadd.f32 %v680, %v840
        %v842 = vpop.f32.mrb[0].mxu0
        %v843 = vadd.f32 %v682, %v842
        %844 = vmatprep.mubr.f32.mxu0 0.0
        %845 = vmatmul.mubr.f32.gmra.mrb[0].mxu0 %v336
        %v846 = vpop.f32.mrb[0].mxu0
        %v847 = vadd.f32 %v686, %v846
        %v848 = vpop.f32.mrb[0].mxu0
        %v849 = vadd.f32 %v688, %v848
        %850 = vdwg.mxu0
        %v851 = vlaneseq
        %v852 = vshrl.u32 %v851, 7
        %v853 = vadd.s32 %v852, 8
        %v854 = vadd.s32 %v852, 16
        %v855 = vadd.s32 %v852, 24
        %v856 = vadd.s32 %v852, 32
        %v857 = vadd.s32 %v852, 40
        %v858 = vadd.s32 %v852, 48
        %v859 = vadd.s32 %v852, 56
        %v860 = vadd.s32 %v852, 64
        %v861 = vadd.s32 %v852, 72
        %v862 = vadd.s32 %v852, 80
        %v863 = vadd.s32 %v852, 88
        %v864 = vadd.s32 %v852, 96
        %v865 = vadd.s32 %v852, 104
        %v866 = vadd.s32 %v852, 112
        %v867 = vadd.s32 %v852, 120
        %vm868 = vcmp.lt.s32.totalorder %v852, 96
        %vm869 = vcmp.lt.s32.totalorder %v853, 96
        %vm870 = vcmp.lt.s32.totalorder %v854, 96
        %vm871 = vcmp.lt.s32.totalorder %v855, 96
        %vm872 = vcmp.lt.s32.totalorder %v856, 96
        %vm873 = vcmp.lt.s32.totalorder %v857, 96
        %vm874 = vcmp.lt.s32.totalorder %v858, 96
        %vm875 = vcmp.lt.s32.totalorder %v859, 96
        %vm876 = vcmp.lt.s32.totalorder %v860, 96
        %vm877 = vcmp.lt.s32.totalorder %v861, 96
        %vm878 = vcmp.lt.s32.totalorder %v862, 96
        %vm879 = vcmp.lt.s32.totalorder %v863, 96
        %vm880 = vcmp.lt.s32.totalorder %v864, 96
        %vm881 = vcmp.lt.s32.totalorder %v865, 96
        %vm882 = vcmp.lt.s32.totalorder %v866, 96
        %vm883 = vcmp.lt.s32.totalorder %v867, 96
        %v884 = vxor.u32 %v757, 2147483648
        %v885 = vxor.u32 %v759, 2147483648
        %v886 = vxor.u32 %v763, 2147483648
        %v887 = vxor.u32 %v765, 2147483648
        %v888 = vxor.u32 %v769, 2147483648
        %v889 = vxor.u32 %v771, 2147483648
        %v890 = vxor.u32 %v775, 2147483648
        %v891 = vxor.u32 %v777, 2147483648
        %v892 = vxor.u32 %v781, 2147483648
        %v893 = vxor.u32 %v783, 2147483648
        %v894 = vxor.u32 %v787, 2147483648
        %v895 = vxor.u32 %v789, 2147483648
        %v896 = vxor.u32 %v793, 2147483648
        %v897 = vxor.u32 %v795, 2147483648
        %v898 = vxor.u32 %v799, 2147483648
        %v899 = vxor.u32 %v801, 2147483648
        %v900 = vxor.u32 %v805, 2147483648
        %v901 = vxor.u32 %v807, 2147483648
        %v902 = vxor.u32 %v811, 2147483648
        %v903 = vxor.u32 %v813, 2147483648
        %v904 = vxor.u32 %v817, 2147483648
        %v905 = vxor.u32 %v819, 2147483648
        %v906 = vxor.u32 %v823, 2147483648
        %v907 = vxor.u32 %v825, 2147483648
        %v908 = vxor.u32 %v829, 2147483648
        %v909 = vxor.u32 %v831, 2147483648
        %v910 = vxor.u32 %v835, 2147483648
        %v911 = vxor.u32 %v837, 2147483648
        %v912 = vxor.u32 %v841, 2147483648
        %v913 = vxor.u32 %v843, 2147483648
        %v914 = vxor.u32 %v847, 2147483648
        %v915 = vxor.u32 %v849, 2147483648
        %v916 = vmul.f32 %v884, 1.442695
        %v917 = vpow.pop %v916
        %v918 = vmul.f32 %v885, 1.442695
        %v919 = vpow.pop %v918
        %v920 = vmul.f32 %v886, 1.442695
        %v921 = vpow.pop %v920
        %v922 = vmul.f32 %v887, 1.442695
        %v923 = vpow.pop %v922
        %v924 = vmul.f32 %v888, 1.442695
        %v925 = vpow.pop %v924
        %v926 = vmul.f32 %v889, 1.442695
        %v927 = vpow.pop %v926
        %v928 = vmul.f32 %v890, 1.442695
        %v929 = vpow.pop %v928
        %v930 = vmul.f32 %v891, 1.442695
        %v931 = vpow.pop %v930
        %v932 = vmul.f32 %v892, 1.442695
        %v933 = vpow.pop %v932
        %v934 = vmul.f32 %v893, 1.442695
        %v935 = vpow.pop %v934
        %v936 = vmul.f32 %v894, 1.442695
        %v937 = vpow.pop %v936
        %v938 = vmul.f32 %v895, 1.442695
        %v939 = vpow.pop %v938
        %v940 = vmul.f32 %v896, 1.442695
        %v941 = vpow.pop %v940
        %v942 = vmul.f32 %v897, 1.442695
        %v943 = vpow.pop %v942
        %v944 = vmul.f32 %v898, 1.442695
        %v945 = vpow.pop %v944
        %v946 = vmul.f32 %v899, 1.442695
        %v947 = vpow.pop %v946
        %v948 = vmul.f32 %v900, 1.442695
        %v949 = vpow.pop %v948
        %v950 = vmul.f32 %v901, 1.442695
        %v951 = vpow.pop %v950
        %v952 = vmul.f32 %v902, 1.442695
        %v953 = vpow.pop %v952
        %v954 = vmul.f32 %v903, 1.442695
        %v955 = vpow.pop %v954
        %v956 = vmul.f32 %v904, 1.442695
        %v957 = vpow.pop %v956
        %v958 = vmul.f32 %v905, 1.442695
        %v959 = vpow.pop %v958
        %v960 = vmul.f32 %v906, 1.442695
        %v961 = vpow.pop %v960
        %v962 = vmul.f32 %v907, 1.442695
        %v963 = vpow.pop %v962
        %v964 = vmul.f32 %v908, 1.442695
        %v965 = vpow.pop %v964
        %v966 = vmul.f32 %v909, 1.442695
        %v967 = vpow.pop %v966
        %v968 = vmul.f32 %v910, 1.442695
        %v969 = vpow.pop %v968
        %v970 = vmul.f32 %v911, 1.442695
        %v971 = vpow.pop %v970
        %v972 = vmul.f32 %v912, 1.442695
        %v973 = vpow.pop %v972
        %v974 = vmul.f32 %v913, 1.442695
        %v975 = vpow.pop %v974
        %v976 = vmul.f32 %v914, 1.442695
        %v977 = vpow.pop %v976
        %v978 = vmul.f32 %v915, 1.442695
        %v979 = vpow.pop %v978
        %v980 = vadd.f32 %v917, 1.0
        %v981 = vadd.f32 %v919, 1.0
        %v982 = vadd.f32 %v921, 1.0
        %v983 = vadd.f32 %v923, 1.0
        %v984 = vadd.f32 %v925, 1.0
        %v985 = vadd.f32 %v927, 1.0
        %v986 = vadd.f32 %v929, 1.0
        %v987 = vadd.f32 %v931, 1.0
        %v988 = vadd.f32 %v933, 1.0
        %v989 = vadd.f32 %v935, 1.0
        %v990 = vadd.f32 %v937, 1.0
        %v991 = vadd.f32 %v939, 1.0
        %v992 = vadd.f32 %v941, 1.0
        %v993 = vadd.f32 %v943, 1.0
        %v994 = vadd.f32 %v945, 1.0
        %v995 = vadd.f32 %v947, 1.0
        %v996 = vadd.f32 %v949, 1.0
        %v997 = vadd.f32 %v951, 1.0
        %v998 = vadd.f32 %v953, 1.0
        %v999 = vadd.f32 %v955, 1.0
        %v1000 = vadd.f32 %v957, 1.0
        %v1001 = vadd.f32 %v959, 1.0
        %v1002 = vadd.f32 %v961, 1.0
        %v1003 = vadd.f32 %v963, 1.0
        %v1004 = vadd.f32 %v965, 1.0
        %v1005 = vadd.f32 %v967, 1.0
        %v1006 = vadd.f32 %v969, 1.0
        %v1007 = vadd.f32 %v971, 1.0
        %v1008 = vadd.f32 %v973, 1.0
        %v1009 = vadd.f32 %v975, 1.0
        %v1010 = vadd.f32 %v977, 1.0
        %v1011 = vadd.f32 %v979, 1.0
        %v1012 = vrcp.pop %v980
        %v1013 = vmul.f32 1.0, %v1012
        %v1014 = vrcp.pop %v981
        %v1015 = vmul.f32 1.0, %v1014
        %v1016 = vrcp.pop %v982
        %v1017 = vmul.f32 1.0, %v1016
        %v1018 = vrcp.pop %v983
        %v1019 = vmul.f32 1.0, %v1018
        %v1020 = vrcp.pop %v984
        %v1021 = vmul.f32 1.0, %v1020
        %v1022 = vrcp.pop %v985
        %v1023 = vmul.f32 1.0, %v1022
        %v1024 = vrcp.pop %v986
        %v1025 = vmul.f32 1.0, %v1024
        %v1026 = vrcp.pop %v987
        %v1027 = vmul.f32 1.0, %v1026
        %v1028 = vrcp.pop %v988
        %v1029 = vmul.f32 1.0, %v1028
        %v1030 = vrcp.pop %v989
        %v1031 = vmul.f32 1.0, %v1030
        %v1032 = vrcp.pop %v990
        %v1033 = vmul.f32 1.0, %v1032
        %v1034 = vrcp.pop %v991
        %v1035 = vmul.f32 1.0, %v1034
        %v1036 = vrcp.pop %v992
        %v1037 = vmul.f32 1.0, %v1036
        %v1038 = vrcp.pop %v993
        %v1039 = vmul.f32 1.0, %v1038
        %v1040 = vrcp.pop %v994
        %v1041 = vmul.f32 1.0, %v1040
        %v1042 = vrcp.pop %v995
        %v1043 = vmul.f32 1.0, %v1042
        %v1044 = vrcp.pop %v996
        %v1045 = vmul.f32 1.0, %v1044
        %v1046 = vrcp.pop %v997
        %v1047 = vmul.f32 1.0, %v1046
        %v1048 = vrcp.pop %v998
        %v1049 = vmul.f32 1.0, %v1048
        %v1050 = vrcp.pop %v999
        %v1051 = vmul.f32 1.0, %v1050
        %v1052 = vrcp.pop %v1000
        %v1053 = vmul.f32 1.0, %v1052
        %v1054 = vrcp.pop %v1001
        %v1055 = vmul.f32 1.0, %v1054
        %v1056 = vrcp.pop %v1002
        %v1057 = vmul.f32 1.0, %v1056
        %v1058 = vrcp.pop %v1003
        %v1059 = vmul.f32 1.0, %v1058
        %v1060 = vrcp.pop %v1004
        %v1061 = vmul.f32 1.0, %v1060
        %v1062 = vrcp.pop %v1005
        %v1063 = vmul.f32 1.0, %v1062
        %v1064 = vrcp.pop %v1006
        %v1065 = vmul.f32 1.0, %v1064
        %v1066 = vrcp.pop %v1007
        %v1067 = vmul.f32 1.0, %v1066
        %v1068 = vrcp.pop %v1008
        %v1069 = vmul.f32 1.0, %v1068
        %v1070 = vrcp.pop %v1009
        %v1071 = vmul.f32 1.0, %v1070
        %v1072 = vrcp.pop %v1010
        %v1073 = vmul.f32 1.0, %v1072
        %v1074 = vrcp.pop %v1011
        %v1075 = vmul.f32 1.0, %v1074
        %v1076 = vtanh.pop %v757
        %v1077 = vtanh.pop %v759
        %v1078 = vtanh.pop %v763
        %v1079 = vtanh.pop %v765
        %v1080 = vtanh.pop %v769
        %v1081 = vtanh.pop %v771
        %v1082 = vtanh.pop %v775
        %v1083 = vtanh.pop %v777
        %v1084 = vtanh.pop %v781
        %v1085 = vtanh.pop %v783
        %v1086 = vtanh.pop %v787
        %v1087 = vtanh.pop %v789
        %v1088 = vtanh.pop %v793
        %v1089 = vtanh.pop %v795
        %v1090 = vtanh.pop %v799
        %v1091 = vtanh.pop %v801
        %v1092 = vtanh.pop %v805
        %v1093 = vtanh.pop %v807
        %v1094 = vtanh.pop %v811
        %v1095 = vtanh.pop %v813
        %v1096 = vtanh.pop %v817
        %v1097 = vtanh.pop %v819
        %v1098 = vtanh.pop %v823
        %v1099 = vtanh.pop %v825
        %v1100 = vtanh.pop %v829
        %v1101 = vtanh.pop %v831
        %v1102 = vtanh.pop %v835
        %v1103 = vtanh.pop %v837
        %v1104 = vtanh.pop %v841
        %v1105 = vtanh.pop %v843
        %v1106 = vtanh.pop %v847
        %v1107 = vtanh.pop %v849
        %v1108 = vsel %vm868, %v1013, %v1076
        %v1109 = vsel %vm868, %v1015, %v1077
        %v1110 = vsel %vm869, %v1017, %v1078
        %v1111 = vsel %vm869, %v1019, %v1079
        %v1112 = vsel %vm870, %v1021, %v1080
        %v1113 = vsel %vm870, %v1023, %v1081
        %v1114 = vsel %vm871, %v1025, %v1082
        %v1115 = vsel %vm871, %v1027, %v1083
        %v1116 = vsel %vm872, %v1029, %v1084
        %v1117 = vsel %vm872, %v1031, %v1085
        %v1118 = vsel %vm873, %v1033, %v1086
        %v1119 = vsel %vm873, %v1035, %v1087
        %v1120 = vsel %vm874, %v1037, %v1088
        %v1121 = vsel %vm874, %v1039, %v1089
        %v1122 = vsel %vm875, %v1041, %v1090
        %v1123 = vsel %vm875, %v1043, %v1091
        %v1124 = vsel %vm876, %v1045, %v1092
        %v1125 = vsel %vm876, %v1047, %v1093
        %v1126 = vsel %vm877, %v1049, %v1094
        %v1127 = vsel %vm877, %v1051, %v1095
        %v1128 = vsel %vm878, %v1053, %v1096
        %v1129 = vsel %vm878, %v1055, %v1097
        %v1130 = vsel %vm879, %v1057, %v1098
        %v1131 = vsel %vm879, %v1059, %v1099
        %v1132 = vsel %vm880, %v1061, %v1100
        %v1133 = vsel %vm880, %v1063, %v1101
        %v1134 = vsel %vm881, %v1065, %v1102
        %v1135 = vsel %vm881, %v1067, %v1103
        %v1136 = vsel %vm882, %v1069, %v1104
        %v1137 = vsel %vm882, %v1071, %v1105
        %v1138 = vsel %vm883, %v1073, %v1106
        %v1139 = vsel %vm883, %v1075, %v1107
        %v1140 = vld [vmem:[%s288] sm:$0xff]
        %v1141 = vld [vmem:[%s288 + $0x8] sm:$0xff]
        %v1142 = vld [vmem:[%s288 + $0x10] sm:$0xff]
        %v1143 = vld [vmem:[%s288 + $0x18] sm:$0xff]
        %v1144 = vld [vmem:[%s288 + $0x20] sm:$0xff]
        %v1145 = vld [vmem:[%s288 + $0x28] sm:$0xff]
        %v1146 = vld [vmem:[%s288 + $0x30] sm:$0xff]
        %v1147 = vld [vmem:[%s288 + $0x38] sm:$0xff]
        %v1148 = vmul.f32 %v1116, %v1140
        %v1149 = vmul.f32 %v1117, %v1141
        %v1150 = vmul.f32 %v1118, %v1142
        %v1151 = vmul.f32 %v1119, %v1143
        %v1152 = vmul.f32 %v1120, %v1144
        %v1153 = vmul.f32 %v1121, %v1145
        %v1154 = vmul.f32 %v1122, %v1146
        %v1155 = vmul.f32 %v1123, %v1147
        %v1156 = vmul.f32 %v1108, %v1132
        %v1157 = vmul.f32 %v1109, %v1133
        %v1158 = vmul.f32 %v1110, %v1134
        %v1159 = vmul.f32 %v1111, %v1135
        %v1160 = vmul.f32 %v1112, %v1136
        %v1161 = vmul.f32 %v1113, %v1137
        %v1162 = vmul.f32 %v1114, %v1138
        %v1163 = vmul.f32 %v1115, %v1139
        %v1164 = vadd.f32 %v1148, %v1156
        %v1165 = vadd.f32 %v1149, %v1157
        %v1166 = vadd.f32 %v1150, %v1158
        %v1167 = vadd.f32 %v1151, %v1159
        %v1168 = vadd.f32 %v1152, %v1160
        %v1169 = vadd.f32 %v1153, %v1161
        %v1170 = vadd.f32 %v1154, %v1162
        %v1171 = vadd.f32 %v1155, %v1163
        %v1172 = vtanh.pop %v1164
        %v1173 = vtanh.pop %v1165
        %v1174 = vtanh.pop %v1166
        %v1175 = vtanh.pop %v1167
        %v1176 = vtanh.pop %v1168
        %v1177 = vtanh.pop %v1169
        %v1178 = vtanh.pop %v1170
        %v1179 = vtanh.pop %v1171
        %v1180 = vmul.f32 %v1124, %v1172
        %v1181 = vmul.f32 %v1125, %v1173
        %v1182 = vmul.f32 %v1126, %v1174
        %v1183 = vmul.f32 %v1127, %v1175
        %v1184 = vmul.f32 %v1128, %v1176
        %v1185 = vmul.f32 %v1129, %v1177
        %v1186 = vmul.f32 %v1130, %v1178
        %v1187 = vmul.f32 %v1131, %v1179
        %1188 = vst [vmem:[%s283] sm:$0xff] %v1164
        %1189 = vst [vmem:[%s283 + $0x8] sm:$0xff] %v1165
        %1190 = vst [vmem:[%s283 + $0x10] sm:$0xff] %v1166
        %1191 = vst [vmem:[%s283 + $0x18] sm:$0xff] %v1167
        %1192 = vst [vmem:[%s283 + $0x20] sm:$0xff] %v1168
        %1193 = vst [vmem:[%s283 + $0x28] sm:$0xff] %v1169
        %1194 = vst [vmem:[%s283 + $0x30] sm:$0xff] %v1170
        %1195 = vst [vmem:[%s283 + $0x38] sm:$0xff] %v1171
        %1196 = vst [vmem:[%s276] sm:$0xff] %v1180
        %1197 = vst [vmem:[%s276 + $0x8] sm:$0xff] %v1181
        %1198 = vst [vmem:[%s276 + $0x10] sm:$0xff] %v1182
        %1199 = vst [vmem:[%s276 + $0x18] sm:$0xff] %v1183
        %1200 = vst [vmem:[%s276 + $0x20] sm:$0xff] %v1184
        %1201 = vst [vmem:[%s276 + $0x28] sm:$0xff] %v1185
        %1202 = vst [vmem:[%s276 + $0x30] sm:$0xff] %v1186
        %1203 = vst [vmem:[%s276 + $0x38] sm:$0xff] %v1187
        %s1204 = sand.u32 %s129, 1
        %s1205 = scalar_lea.sflag [#allocation4], %s1204
        %s1206 = sand.u32 %s129, 1
        %s1207 = smul.addr %s1206, 64
        %s1208 = scalar_lea.vmem [#allocation7], %s1207
        %s1209 = sand.u32 %s155, 1
        %s1210 = scalar_lea.sflag [#allocation9], %s1209
        %s1211 = sand.u32 %s155, 1
        %s1212 = smul.addr %s1211, 64
        %s1213 = scalar_lea.vmem [#allocation8], %s1212
        // Predicated region
        $region45: #{tpu_custom_call.1} parent=35 // pred_check
          %p1214 = pneg %p139
        $region46: #{tpu_custom_call.1} parent=35 // pred_check_branch
          %1216 = sbr.rel (%p1214) target = $region48
        $region47: #{tpu_custom_call.1} parent=35 // pred_region
          %s1218 = ssub.s32 1024, 1024
          %1219 = vsyncadd %s1205, %s1218
          %s1220 = smul.addr %s27, 8
          %s1221 = smul.addr %s1220, 128
          %s1222 = scalar_lea.hbm %s4, %s1221
          %s1223 = sshll.u32 %s1208, 4
          %s1224 = int_to_ptr.vmem [resolvable:$true] %s1223
          %1229 = dma.vmem_to_hbm [thread:$0]  %s1224, 1024, %s1222, %s1205, 256, 256, 16
        $region48: #{tpu_custom_call.1} parent=35 // pred_fallthru
          _
        // Predicated region
        $region49: #{tpu_custom_call.1} parent=35 // pred_check
          %p1230 = pneg %p165
        $region50: #{tpu_custom_call.1} parent=35 // pred_check_branch
          %1232 = sbr.rel (%p1230) target = $region52
        $region51: #{tpu_custom_call.1} parent=35 // pred_region
          %s1234 = ssub.s32 1024, 1024
          %1235 = vsyncadd %s1210, %s1234
          %s1236 = smul.addr %s27, 8
          %s1237 = smul.addr %s1236, 128
          %s1238 = scalar_lea.hbm %s5, %s1237
          %s1239 = sshll.u32 %s1213, 4
          %s1240 = int_to_ptr.vmem [resolvable:$true] %s1239
          %1245 = dma.vmem_to_hbm [thread:$0]  %s1240, 1024, %s1238, %s1210, 256, 256, 16
        $region52: #{tpu_custom_call.1} parent=35 // pred_fallthru
          _
      $region36: #{tpu_custom_call.1} parent=5 // pred_fallthru
        _
      %p1246 = scmp.le.s32.totalorder 2, %s22
      // Predicated region
      $region53: #{tpu_custom_call.1} parent=5 // pred_check
        %p1247 = pneg %p1246
      $region54: #{tpu_custom_call.1} parent=5 // pred_check_branch
        %1249 = sbr.rel (%p1247) target = $region56
      $region55: #{tpu_custom_call.1} parent=5 // pred_region
        %s1250 = ssub.s32 %s22, 2
        // Predicated region
        $region57: #{tpu_custom_call.1} parent=55 // pred_check
          %p1251 = pneg %p145
        $region58: #{tpu_custom_call.1} parent=55 // pred_check_branch
          %1253 = sbr.rel (%p1251) target = $region60
        $region59: #{tpu_custom_call.1} parent=55 // pred_region
          %s1254 = sand.u32 %s130, 1
          %s1255 = scalar_lea.sflag [#allocation4], %s1254
          %s1256 = sand.u32 %s130, 1
          %s1257 = smul.addr %s1256, 64
          %s1258 = scalar_lea.vmem [#allocation7], %s1257
          %1259 = dma.done %s1255, 1024
        $region60: #{tpu_custom_call.1} parent=55 // pred_fallthru
          _
        // Predicated region
        $region61: #{tpu_custom_call.1} parent=55 // pred_check
          %p1260 = pneg %p171
        $region62: #{tpu_custom_call.1} parent=55 // pred_check_branch
          %1262 = sbr.rel (%p1260) target = $region64
        $region63: #{tpu_custom_call.1} parent=55 // pred_region
          %s1263 = sand.u32 %s156, 1
          %s1264 = scalar_lea.sflag [#allocation9], %s1263
          %s1265 = sand.u32 %s156, 1
          %s1266 = smul.addr %s1265, 64
          %s1267 = scalar_lea.vmem [#allocation8], %s1266
          %1268 = dma.done %s1264, 1024
        $region64: #{tpu_custom_call.1} parent=55 // pred_fallthru
          _
      $region56: #{tpu_custom_call.1} parent=5 // pred_fallthru
        _
    $region6: #{tpu_custom_call.1} parent=1 // loop_footer
      %s26 = sadd.s32 1, %s22
    $region7: #{tpu_custom_call.1} parent=1 // loop_footer_branch
      %21 = sbr.rel target = $region3
    $region8: #{tpu_custom_call.1} parent=1 // loop_exit
      _
    %1269 = vsyncpa [#allocation3], 1
    %s1270 = scalar_lea.sflag [#allocation3], 1
    %1271 = vsyncpa %s1270, 1
    %1272 = vsyncpa [#allocation6], 1
    %1273 = vsyncpa [#allocation4], 1
    %s1274 = scalar_lea.sflag [#allocation4], 1
    %1275 = vsyncpa %s1274, 1
    %1276 = vsyncpa [#allocation9], 1
    %s1277 = scalar_lea.sflag [#allocation9], 1
    %1278 = vsyncpa %s1277, 1

</llo_original>
